<compile_context>
chip_gen: v7x
topology: tpu7x:2x2x1
jax: 0.10.0
libtpu: 0.0.40
codegen_flags: <defaults>
</compile_context>

<pallas_src>
import functools

import numpy as np
import jax
import jax.numpy as jnp
from jax import lax
from jax.experimental import pallas as pl
from jax.experimental.pallas import tpu as pltpu

EPS = 1e-5


# ----------------------------------------------------------------------------
# Fused kernel: bn1 -> relu -> 1x1 conv (bn2 scale folded) -> +bias -> relu
#               -> 3x3 SAME conv -> concat([x, out]) along channels.
# One grid step == B images, folded into the lane axis (lane dim = B*H*W).
#
#   x_ref   : (1, Cin, BHW)        B input images, channels on sublanes
#   msk_ref : (9, BHW)             precomputed 0/1 SAME-padding masks per tap
#   prm_ref : (Cmax, 3)            col0 = bn1 scale, col1 = bn1 bias,
#                                  col2 = bn2 bias (bn2 scale folded into w1)
#   w1_ref  : (Cinter, Cin)        1x1 weight, bn2-scale folded, transposed
#   w2_ref  : (Cout_p, 9*Cinter)   3x3 weight, rows zero-padded to mult. of 8,
#                                  column index = (dy*3 + dx)*Cinter + ci
#   o_ref   : (1, Cin+Cout, BHW)   concat([x, conv_out]) along channel dim
#   patches_ref (scratch, VMEM)    (9*Cinter, BHW) f32 im2col matrix
# ----------------------------------------------------------------------------
def _bottleneck_fused_kernel(x_ref, msk_ref, prm_ref, w1_ref, w2_ref, o_ref,
                             patches_ref, *, W):
    Cin = x_ref.shape[1]
    BHW = x_ref.shape[2]
    Cinter = w1_ref.shape[0]
    Cout = o_ref.shape[1] - Cin

    x = x_ref[0].astype(jnp.float32)                     # (Cin, BHW)
    prm = prm_ref[...]                                   # (Cmax, 3)
    s1 = prm[:Cin, 0:1]                                  # (Cin, 1)
    b1 = prm[:Cin, 1:2]                                  # (Cin, 1)
    b2 = prm[:Cinter, 2:3]                               # (Cinter, 1)

    # ---- bn1 -> relu (per-channel scale/bias, pixels lane-dense) ----------
    a = jnp.maximum(x * s1 + b1, 0.0)                    # (Cin, BHW)

    # ---- 1x1 conv (bn2 scale pre-folded) + bn2 bias + relu ----------------
    w1t = w1_ref[...].astype(jnp.float32)                # (Cinter, Cin)
    if Cin <= 8:
        # K = Cin is tiny: broadcast FMAs on the VPU beat a starved MXU pass.
        h = jnp.broadcast_to(b2, (Cinter, BHW))
        for c in range(Cin):                             # static unroll
            h = h + w1t[:, c:c + 1] * a[c:c + 1, :]
    else:
        h = jnp.dot(w1t, a, preferred_element_type=jnp.float32) + b2
    h = jnp.maximum(h, 0.0)                              # relu(bn2(conv1(.)))

    # ---- 3x3 SAME conv: zero-filled lane shifts -> im2col -> one matmul ---
    # Flat-padded buffer so every tap is a single static lane slice with the
    # out-of-range flat indices already zero; the precomputed per-tap mask
    # zeroes the row-wrap / image-wrap positions (SAME-padding boundary and,
    # with B images folded into lanes, the image boundary too).  Each masked
    # slab is written straight into the VMEM patches scratch (no concat).
    zpad = jnp.zeros((Cinter, W + 1), jnp.float32)
    hflat = jnp.concatenate([zpad, h, zpad], axis=1)     # (Cinter, BHW+2W+2)

    for t in range(9):                                   # static unroll
        dy = t // 3 - 1
        dx = t % 3 - 1
        start = (W + 1) + dy * W + dx                    # flat source offset
        src = hflat[:, start:start + BHW]                # h[:, p+off], 0-fill
        m = msk_ref[t:t + 1, :]                          # (1, BHW) 0/1 f32
        patches_ref[t * Cinter:(t + 1) * Cinter, :] = src * m

    conv_p = jnp.dot(w2_ref[...].astype(jnp.float32), patches_ref[...],
                     preferred_element_type=jnp.float32)  # (Cout_p, BHW)

    # ---- write concat([x, out], channel dim) as two direct, lane-dense ----
    # stores (no sublane concat, no dtype round trip of the passthrough x).
    o_ref[0, :Cin, :] = x_ref[0]
    o_ref[0, Cin:Cin + Cout, :] = conv_p[:Cout, :].astype(o_ref.dtype)


# ----------------------------------------------------------------------------
# Wrapper
# ----------------------------------------------------------------------------
def _fold_bn(gamma, beta, mean, var):
    scale = gamma / jnp.sqrt(var + EPS)
    bias = beta - mean * scale
    return scale, bias


def _build_tap_masks(H, W, B):
    """(9, B*H*W) 0/1 f32 masks: tap (dy,dx) valid for each flattened pixel."""
    HW = H * W
    q = np.arange(B * HW) % HW                           # within-image pixel
    yy = q // W
    xx = q % W
    masks = np.zeros((9, B * HW), np.float32)
    t = 0
    for dy in (-1, 0, 1):
        for dx in (-1, 0, 1):
            valid = ((yy + dy >= 0) & (yy + dy < H) &
                     (xx + dx >= 0) & (xx + dx < W))
            masks[t] = valid.astype(np.float32)
            t += 1
    return jnp.asarray(masks)


@jax.jit
def bottleneck_block(x_nchw, params):
    """params = (g1, be1, m1, v1, w1_oi, g2, be2, m2, v2, w2_oihw)

    w1_oi   : (Cinter, Cin)          PyTorch conv1 weight (squeezed 1x1)
    w2_oihw : (Cout, Cinter, 3, 3)   PyTorch conv2 weight
    """
    (g1, be1, m1, v1, w1_oi, g2, be2, m2, v2, w2_oihw) = params
    N, Cin, H, W = x_nchw.shape
    Cinter = w1_oi.shape[0]
    Cout = w2_oihw.shape[0]
    HW = H * W

    # Grid: 2 fat steps when N is even (keeps both v7x TensorCores busy and
    # amortizes per-step overhead over B = N//2 images folded into the lane
    # axis); a single fat step otherwise.
    G = 2 if (N % 2 == 0 and N >= 2) else 1
    B = N // G
    BHW = B * HW

    s1, b1 = _fold_bn(g1, be1, m1, v1)                   # (Cin,)
    s2, b2 = _fold_bn(g2, be2, m2, v2)                   # (Cinter,)

    # Fold bn2 scale into the 1x1 weight (exact: conv1 has no bias).
    w1t = (w1_oi * s2[:, None]).astype(jnp.float32)      # (Cinter, Cin)

    # 3x3 weight -> (Cout_p, 9*Cinter), column index (dy*3+dx)*Cinter + ci.
    w2mat = jnp.transpose(w2_oihw, (0, 2, 3, 1)).reshape(Cout, 9 * Cinter)
    Cout_p = ((Cout + 7) // 8) * 8                       # sublane-aligned rows
    w2mat_p = jnp.zeros((Cout_p, 9 * Cinter),
                        jnp.float32).at[:Cout].set(w2mat)

    # Pack remaining per-channel vectors into one tiny block
    # (channels on sublanes so the kernel broadcasts along lanes only).
    Cmax = max(Cin, Cinter)
    prm = (jnp.zeros((Cmax, 3), jnp.float32)
           .at[:Cin, 0].set(s1)
           .at[:Cin, 1].set(b1)
           .at[:Cinter, 2].set(b2))

    # Precomputed SAME-padding / image-boundary masks (baked constants).
    masks = _build_tap_masks(H, W, B)                    # (9, BHW)

    # Fold B images into the lane axis (free reshape when B == 1).
    if B > 1:
        x_g = (x_nchw.reshape(G, B, Cin, HW)
               .transpose(0, 2, 1, 3)
               .reshape(G, Cin, BHW))
    else:
        x_g = x_nchw.reshape(G, Cin, BHW)

    # Rough per-step VMEM footprint (f32 bytes) with 2x headroom.
    est = 4 * (2 * Cin * BHW                 # input block (double-buffered)
               + 2 * (Cin + Cout) * BHW      # output block (double-buffered)
               + 9 * BHW                     # masks
               + 9 * Cinter * BHW            # patches scratch
               + 6 * Cinter * BHW            # h / hflat / live temporaries
               + Cout_p * 9 * Cinter + (Cmax + Cinter) * 128)
    vmem_limit = int(min(100 * 1024 * 1024, max(16 * 1024 * 1024, 2 * est)))

    kernel = functools.partial(_bottleneck_fused_kernel, W=W)
    out = pl.pallas_call(
        kernel,
        out_shape=jax.ShapeDtypeStruct((G, Cin + Cout, BHW), x_nchw.dtype),
        grid_spec=pltpu.PrefetchScalarGridSpec(
            num_scalar_prefetch=0,
            grid=(G,),
            in_specs=[
                pl.BlockSpec((1, Cin, BHW), lambda n: (n, 0, 0)),
                pl.BlockSpec((9, BHW), lambda n: (0, 0)),
                pl.BlockSpec((Cmax, 3), lambda n: (0, 0)),
                pl.BlockSpec((Cinter, Cin), lambda n: (0, 0)),
                pl.BlockSpec((Cout_p, 9 * Cinter), lambda n: (0, 0)),
            ],
            out_specs=pl.BlockSpec((1, Cin + Cout, BHW), lambda n: (n, 0, 0)),
            scratch_shapes=[pltpu.VMEM((9 * Cinter, BHW), jnp.float32)],
        ),
        compiler_params=pltpu.CompilerParams(
            dimension_semantics=("parallel",),
            vmem_limit_bytes=vmem_limit,
        ),
    )(x_g, masks, prm, w1t, w2mat_p)

    if B > 1:
        return (out.reshape(G, Cin + Cout, B, HW)
                .transpose(0, 2, 1, 3)
                .reshape(N, Cin + Cout, H, W))
    return out.reshape(N, Cin + Cout, H, W)


# ----------------------------------------------------------------------------
# Pure-JAX reference (same math, PyTorch layouts) for a correctness check.
# ----------------------------------------------------------------------------
def reference(x_nchw, params):
    (g1, be1, m1, v1, w1_oi, g2, be2, m2, v2, w2_oihw) = params
    s1, b1 = _fold_bn(g1, be1, m1, v1)
    s2, b2 = _fold_bn(g2, be2, m2, v2)
    xf = x_nchw.astype(jnp.float32)
    a = jnp.maximum(xf * s1[None, :, None, None] + b1[None, :, None, None], 0.)
    h = jnp.einsum("nchw,oc->nohw", a, w1_oi)
    h = jnp.maximum(h * s2[None, :, None, None] + b2[None, :, None, None], 0.)
    out = lax.conv_general_dilated(
        h, w2_oihw, window_strides=(1, 1), padding=((1, 1), (1, 1)),
        dimension_numbers=("NCHW", "OIHW", "NCHW"))
    return jnp.concatenate([x_nchw, out], axis=1)


def make_params(key, in_planes, out_planes):
    inter = out_planes * 4
    ks = jax.random.split(key, 10)
    g1 = 1.0 + 0.1 * jax.random.normal(ks[0], (in_planes,), jnp.float32)
    be1 = 0.1 * jax.random.normal(ks[1], (in_planes,), jnp.float32)
    m1 = 0.05 * jax.random.normal(ks[2], (in_planes,), jnp.float32)
    v1 = jnp.abs(1.0 + 0.1 * jax.random.normal(ks[3], (in_planes,), jnp.float32))
    w1 = 0.2 * jax.random.normal(ks[4], (inter, in_planes), jnp.float32)
    g2 = 1.0 + 0.1 * jax.random.normal(ks[5], (inter,), jnp.float32)
    be2 = 0.1 * jax.random.normal(ks[6], (inter,), jnp.float32)
    m2 = 0.02 * jax.random.normal(ks[7], (inter,), jnp.float32)
    v2 = jnp.abs(1.0 + 0.1 * jax.random.normal(ks[8], (inter,), jnp.float32))
    w2 = 0.1 * jax.random.normal(ks[9], (out_planes, inter, 3, 3), jnp.float32)
    return (g1, be1, m1, v1, w1, g2, be2, m2, v2, w2)


if __name__ == "__main__":
    key = jax.random.PRNGKey(0)
    kx1, kp1, kx2, kp2 = jax.random.split(key, 4)

    # Config A: module example (in_planes=4, out_planes=4 -> inter=16), N=2.
    # Exercises the Cin<=8 VPU-FMA path for conv1 (grid=(2,), B=1).
    x1 = jax.random.normal(kx1, (2, 4, 16, 16), jnp.float32)
    p1 = make_params(kp1, 4, 4)
    y1 = jax.block_until_ready(bottleneck_block(x1, p1))
    r1 = jax.block_until_ready(reference(x1, p1))
    assert y1.shape == (2, 8, 16, 16), y1.shape
    err1 = float(jnp.max(jnp.abs(y1 - r1)))
    assert jnp.allclose(y1, r1, atol=5e-4, rtol=5e-4), err1

    # Config B: in_planes=16, out_planes=4, N=4, 8x8.
    # Exercises the Cin>8 MXU dot path for conv1 AND lane-batched images
    # (grid=(2,), B=2 images folded into the lane axis).
    x2 = jax.random.normal(kx2, (4, 16, 8, 8), jnp.float32)
    p2 = make_params(kp2, 16, 4)
    y2 = jax.block_until_ready(bottleneck_block(x2, p2))
    r2 = jax.block_until_ready(reference(x2, p2))
    assert y2.shape == (4, 20, 8, 8), y2.shape
    err2 = float(jnp.max(jnp.abs(y2 - r2)))
    assert jnp.allclose(y2, r2, atol=5e-4, rtol=5e-4), err2

    print("KERNEL_OK")
</pallas_src>

<mosaic_0001>
module attributes {stable_mosaic.version = 11 : i64} {
  func.func @_bottleneck_fused_kernel(%arg0: i32, %arg1: memref<1x4x256xf32, #tpu.memory_space<vmem>>, %arg2: memref<9x256xf32, #tpu.memory_space<vmem>>, %arg3: memref<16x3xf32, #tpu.memory_space<vmem>>, %arg4: memref<16x4xf32, #tpu.memory_space<vmem>>, %arg5: memref<8x144xf32, #tpu.memory_space<vmem>>, %arg6: memref<1x8x256xf32, #tpu.memory_space<vmem>>, %arg7: memref<144x256xf32, #tpu.memory_space<vmem>>) attributes {dimension_semantics = [#tpu.dimension_semantics<parallel>], iteration_bounds = array<i64: 2>, scalar_prefetch = 0 : i64, scratch_operands = 1 : i64, tpu.core_type = #tpu.core_type<tc>, window_params = [{transform_indices = @transform_0, window_bounds = array<i64: 1, 4, 256>}, {pipeline_mode = #tpu.pipeline_mode<synchronous>, transform_indices = @transform_1, window_bounds = array<i64: 9, 256>}, {pipeline_mode = #tpu.pipeline_mode<synchronous>, transform_indices = @transform_2, window_bounds = array<i64: 16, 3>}, {pipeline_mode = #tpu.pipeline_mode<synchronous>, transform_indices = @transform_3, window_bounds = array<i64: 16, 4>}, {pipeline_mode = #tpu.pipeline_mode<synchronous>, transform_indices = @transform_4, window_bounds = array<i64: 8, 144>}, {transform_indices = @transform_5, window_bounds = array<i64: 1, 8, 256>}]} {
    %c0 = arith.constant 0 : index
    %c0_0 = arith.constant 0 : index
    %c0_1 = arith.constant 0 : index
    %0 = vector.load %arg1[%c0, %c0_0, %c0_1] : memref<1x4x256xf32, #tpu.memory_space<vmem>>, vector<1x4x256xf32>
    %1 = vector.shape_cast %0 : vector<1x4x256xf32> to vector<4x256xf32>
    %c0_2 = arith.constant 0 : index
    %c0_3 = arith.constant 0 : index
    %2 = vector.load %arg3[%c0_2, %c0_3] : memref<16x3xf32, #tpu.memory_space<vmem>>, vector<16x3xf32>
    %3 = vector.extract_strided_slice %2 {offsets = [0, 0], sizes = [4, 1], strides = [1, 1]} : vector<16x3xf32> to vector<4x1xf32>
    %4 = vector.extract_strided_slice %2 {offsets = [0, 1], sizes = [4, 1], strides = [1, 1]} : vector<16x3xf32> to vector<4x1xf32>
    %5 = vector.extract_strided_slice %2 {offsets = [0, 2], sizes = [16, 1], strides = [1, 1]} : vector<16x3xf32> to vector<16x1xf32>
    %6 = vector.broadcast %3 : vector<4x1xf32> to vector<4x256xf32>
    %7 = arith.mulf %1, %6 : vector<4x256xf32>
    %8 = vector.broadcast %4 : vector<4x1xf32> to vector<4x256xf32>
    %9 = arith.addf %7, %8 : vector<4x256xf32>
    %cst = arith.constant 0.000000e+00 : f32
    %10 = vector.broadcast %cst : f32 to vector<4x256xf32>
    %11 = arith.maximumf %9, %10 : vector<4x256xf32>
    %c0_4 = arith.constant 0 : index
    %c0_5 = arith.constant 0 : index
    %12 = vector.load %arg4[%c0_4, %c0_5] : memref<16x4xf32, #tpu.memory_space<vmem>>, vector<16x4xf32>
    %13 = vector.shape_cast %5 : vector<16x1xf32> to vector<16x1xf32>
    %14 = vector.broadcast %13 : vector<16x1xf32> to vector<16x256xf32>
    %15 = vector.extract_strided_slice %12 {offsets = [0, 0], sizes = [16, 1], strides = [1, 1]} : vector<16x4xf32> to vector<16x1xf32>
    %16 = vector.extract_strided_slice %11 {offsets = [0, 0], sizes = [1, 256], strides = [1, 1]} : vector<4x256xf32> to vector<1x256xf32>
    %17 = vector.broadcast %15 : vector<16x1xf32> to vector<16x256xf32>
    %18 = vector.broadcast %16 : vector<1x256xf32> to vector<16x256xf32>
    %19 = arith.mulf %17, %18 : vector<16x256xf32>
    %20 = arith.addf %14, %19 : vector<16x256xf32>
    %21 = vector.extract_strided_slice %12 {offsets = [0, 1], sizes = [16, 1], strides = [1, 1]} : vector<16x4xf32> to vector<16x1xf32>
    %22 = vector.extract_strided_slice %11 {offsets = [1, 0], sizes = [1, 256], strides = [1, 1]} : vector<4x256xf32> to vector<1x256xf32>
    %23 = vector.broadcast %21 : vector<16x1xf32> to vector<16x256xf32>
    %24 = vector.broadcast %22 : vector<1x256xf32> to vector<16x256xf32>
    %25 = arith.mulf %23, %24 : vector<16x256xf32>
    %26 = arith.addf %20, %25 : vector<16x256xf32>
    %27 = vector.extract_strided_slice %12 {offsets = [0, 2], sizes = [16, 1], strides = [1, 1]} : vector<16x4xf32> to vector<16x1xf32>
    %28 = vector.extract_strided_slice %11 {offsets = [2, 0], sizes = [1, 256], strides = [1, 1]} : vector<4x256xf32> to vector<1x256xf32>
    %29 = vector.broadcast %27 : vector<16x1xf32> to vector<16x256xf32>
    %30 = vector.broadcast %28 : vector<1x256xf32> to vector<16x256xf32>
    %31 = arith.mulf %29, %30 : vector<16x256xf32>
    %32 = arith.addf %26, %31 : vector<16x256xf32>
    %33 = vector.extract_strided_slice %12 {offsets = [0, 3], sizes = [16, 1], strides = [1, 1]} : vector<16x4xf32> to vector<16x1xf32>
    %34 = vector.extract_strided_slice %11 {offsets = [3, 0], sizes = [1, 256], strides = [1, 1]} : vector<4x256xf32> to vector<1x256xf32>
    %35 = vector.broadcast %33 : vector<16x1xf32> to vector<16x256xf32>
    %36 = vector.broadcast %34 : vector<1x256xf32> to vector<16x256xf32>
    %37 = arith.mulf %35, %36 : vector<16x256xf32>
    %38 = arith.addf %32, %37 : vector<16x256xf32>
    %cst_6 = arith.constant 0.000000e+00 : f32
    %39 = vector.broadcast %cst_6 : f32 to vector<16x256xf32>
    %40 = arith.maximumf %38, %39 : vector<16x256xf32>
    %cst_7 = arith.constant 0.000000e+00 : f32
    %41 = vector.broadcast %cst_7 : f32 to vector<16x17xf32>
    %42 = tpu.concatenate %41, %40, %41 in 1 : vector<16x17xf32>, vector<16x256xf32>, vector<16x17xf32> -> vector<16x290xf32>
    %43 = vector.extract_strided_slice %42 {offsets = [0, 0], sizes = [16, 256], strides = [1, 1]} : vector<16x290xf32> to vector<16x256xf32>
    %c0_8 = arith.constant 0 : index
    %c0_9 = arith.constant 0 : index
    %44 = vector.load %arg2[%c0_8, %c0_9] : memref<9x256xf32, #tpu.memory_space<vmem>>, vector<1x256xf32>
    %45 = vector.broadcast %44 : vector<1x256xf32> to vector<16x256xf32>
    %46 = arith.mulf %43, %45 : vector<16x256xf32>
    %c0_10 = arith.constant 0 : index
    %c0_11 = arith.constant 0 : index
    %47 = vector.load %arg7[%c0_10, %c0_11] : memref<144x256xf32, #tpu.memory_space<vmem>>, vector<16x256xf32>
    tpu.vector_store %arg7[%c0_10, %c0_11], %46 {strides = array<i32>} : memref<144x256xf32, #tpu.memory_space<vmem>>, vector<16x256xf32>,
    %48 = vector.extract_strided_slice %42 {offsets = [0, 1], sizes = [16, 256], strides = [1, 1]} : vector<16x290xf32> to vector<16x256xf32>
    %c1 = arith.constant 1 : index
    %c0_12 = arith.constant 0 : index
    %49 = vector.load %arg2[%c1, %c0_12] : memref<9x256xf32, #tpu.memory_space<vmem>>, vector<1x256xf32>
    %50 = vector.broadcast %49 : vector<1x256xf32> to vector<16x256xf32>
    %51 = arith.mulf %48, %50 : vector<16x256xf32>
    %c16 = arith.constant 16 : index
    %c0_13 = arith.constant 0 : index
    %52 = vector.load %arg7[%c16, %c0_13] : memref<144x256xf32, #tpu.memory_space<vmem>>, vector<16x256xf32>
    tpu.vector_store %arg7[%c16, %c0_13], %51 {strides = array<i32>} : memref<144x256xf32, #tpu.memory_space<vmem>>, vector<16x256xf32>,
    %53 = vector.extract_strided_slice %42 {offsets = [0, 2], sizes = [16, 256], strides = [1, 1]} : vector<16x290xf32> to vector<16x256xf32>
    %c2 = arith.constant 2 : index
    %c0_14 = arith.constant 0 : index
    %54 = vector.load %arg2[%c2, %c0_14] : memref<9x256xf32, #tpu.memory_space<vmem>>, vector<1x256xf32>
    %55 = vector.broadcast %54 : vector<1x256xf32> to vector<16x256xf32>
    %56 = arith.mulf %53, %55 : vector<16x256xf32>
    %c32 = arith.constant 32 : index
    %c0_15 = arith.constant 0 : index
    %57 = vector.load %arg7[%c32, %c0_15] : memref<144x256xf32, #tpu.memory_space<vmem>>, vector<16x256xf32>
    tpu.vector_store %arg7[%c32, %c0_15], %56 {strides = array<i32>} : memref<144x256xf32, #tpu.memory_space<vmem>>, vector<16x256xf32>,
    %58 = vector.extract_strided_slice %42 {offsets = [0, 16], sizes = [16, 256], strides = [1, 1]} : vector<16x290xf32> to vector<16x256xf32>
    %c3 = arith.constant 3 : index
    %c0_16 = arith.constant 0 : index
    %59 = vector.load %arg2[%c3, %c0_16] : memref<9x256xf32, #tpu.memory_space<vmem>>, vector<1x256xf32>
    %60 = vector.broadcast %59 : vector<1x256xf32> to vector<16x256xf32>
    %61 = arith.mulf %58, %60 : vector<16x256xf32>
    %c48 = arith.constant 48 : index
    %c0_17 = arith.constant 0 : index
    %62 = vector.load %arg7[%c48, %c0_17] : memref<144x256xf32, #tpu.memory_space<vmem>>, vector<16x256xf32>
    tpu.vector_store %arg7[%c48, %c0_17], %61 {strides = array<i32>} : memref<144x256xf32, #tpu.memory_space<vmem>>, vector<16x256xf32>,
    %63 = vector.extract_strided_slice %42 {offsets = [0, 17], sizes = [16, 256], strides = [1, 1]} : vector<16x290xf32> to vector<16x256xf32>
    %c4 = arith.constant 4 : index
    %c0_18 = arith.constant 0 : index
    %64 = vector.load %arg2[%c4, %c0_18] : memref<9x256xf32, #tpu.memory_space<vmem>>, vector<1x256xf32>
    %65 = vector.broadcast %64 : vector<1x256xf32> to vector<16x256xf32>
    %66 = arith.mulf %63, %65 : vector<16x256xf32>
    %c64 = arith.constant 64 : index
    %c0_19 = arith.constant 0 : index
    %67 = vector.load %arg7[%c64, %c0_19] : memref<144x256xf32, #tpu.memory_space<vmem>>, vector<16x256xf32>
    tpu.vector_store %arg7[%c64, %c0_19], %66 {strides = array<i32>} : memref<144x256xf32, #tpu.memory_space<vmem>>, vector<16x256xf32>,
    %68 = vector.extract_strided_slice %42 {offsets = [0, 18], sizes = [16, 256], strides = [1, 1]} : vector<16x290xf32> to vector<16x256xf32>
    %c5 = arith.constant 5 : index
    %c0_20 = arith.constant 0 : index
    %69 = vector.load %arg2[%c5, %c0_20] : memref<9x256xf32, #tpu.memory_space<vmem>>, vector<1x256xf32>
    %70 = vector.broadcast %69 : vector<1x256xf32> to vector<16x256xf32>
    %71 = arith.mulf %68, %70 : vector<16x256xf32>
    %c80 = arith.constant 80 : index
    %c0_21 = arith.constant 0 : index
    %72 = vector.load %arg7[%c80, %c0_21] : memref<144x256xf32, #tpu.memory_space<vmem>>, vector<16x256xf32>
    tpu.vector_store %arg7[%c80, %c0_21], %71 {strides = array<i32>} : memref<144x256xf32, #tpu.memory_space<vmem>>, vector<16x256xf32>,
    %73 = vector.extract_strided_slice %42 {offsets = [0, 32], sizes = [16, 256], strides = [1, 1]} : vector<16x290xf32> to vector<16x256xf32>
    %c6 = arith.constant 6 : index
    %c0_22 = arith.constant 0 : index
    %74 = vector.load %arg2[%c6, %c0_22] : memref<9x256xf32, #tpu.memory_space<vmem>>, vector<1x256xf32>
    %75 = vector.broadcast %74 : vector<1x256xf32> to vector<16x256xf32>
    %76 = arith.mulf %73, %75 : vector<16x256xf32>
    %c96 = arith.constant 96 : index
    %c0_23 = arith.constant 0 : index
    %77 = vector.load %arg7[%c96, %c0_23] : memref<144x256xf32, #tpu.memory_space<vmem>>, vector<16x256xf32>
    tpu.vector_store %arg7[%c96, %c0_23], %76 {strides = array<i32>} : memref<144x256xf32, #tpu.memory_space<vmem>>, vector<16x256xf32>,
    %78 = vector.extract_strided_slice %42 {offsets = [0, 33], sizes = [16, 256], strides = [1, 1]} : vector<16x290xf32> to vector<16x256xf32>
    %c7 = arith.constant 7 : index
    %c0_24 = arith.constant 0 : index
    %79 = vector.load %arg2[%c7, %c0_24] : memref<9x256xf32, #tpu.memory_space<vmem>>, vector<1x256xf32>
    %80 = vector.broadcast %79 : vector<1x256xf32> to vector<16x256xf32>
    %81 = arith.mulf %78, %80 : vector<16x256xf32>
    %c112 = arith.constant 112 : index
    %c0_25 = arith.constant 0 : index
    %82 = vector.load %arg7[%c112, %c0_25] : memref<144x256xf32, #tpu.memory_space<vmem>>, vector<16x256xf32>
    tpu.vector_store %arg7[%c112, %c0_25], %81 {strides = array<i32>} : memref<144x256xf32, #tpu.memory_space<vmem>>, vector<16x256xf32>,
    %83 = vector.extract_strided_slice %42 {offsets = [0, 34], sizes = [16, 256], strides = [1, 1]} : vector<16x290xf32> to vector<16x256xf32>
    %c8 = arith.constant 8 : index
    %c0_26 = arith.constant 0 : index
    %84 = vector.load %arg2[%c8, %c0_26] : memref<9x256xf32, #tpu.memory_space<vmem>>, vector<1x256xf32>
    %85 = vector.broadcast %84 : vector<1x256xf32> to vector<16x256xf32>
    %86 = arith.mulf %83, %85 : vector<16x256xf32>
    %c128 = arith.constant 128 : index
    %c0_27 = arith.constant 0 : index
    %87 = vector.load %arg7[%c128, %c0_27] : memref<144x256xf32, #tpu.memory_space<vmem>>, vector<16x256xf32>
    tpu.vector_store %arg7[%c128, %c0_27], %86 {strides = array<i32>} : memref<144x256xf32, #tpu.memory_space<vmem>>, vector<16x256xf32>,
    %c0_28 = arith.constant 0 : index
    %c0_29 = arith.constant 0 : index
    %88 = vector.load %arg5[%c0_28, %c0_29] : memref<8x144xf32, #tpu.memory_space<vmem>>, vector<8x144xf32>
    %c0_30 = arith.constant 0 : index
    %c0_31 = arith.constant 0 : index
    %89 = vector.load %arg7[%c0_30, %c0_31] : memref<144x256xf32, #tpu.memory_space<vmem>>, vector<144x256xf32>
    %cst_32 = arith.constant dense<0.000000e+00> : vector<8x256xf32>
    %90 = tpu.matmul %88, %89, %cst_32 {dimension_numbers = #tpu.dot_dimension_numbers<[1], [0], [0], [1], [0, 0, 1, 1], [], []>} : vector<8x144xf32>, vector<144x256xf32>, vector<8x256xf32> -> vector<8x256xf32>
    %c0_33 = arith.constant 0 : index
    %c0_34 = arith.constant 0 : index
    %c0_35 = arith.constant 0 : index
    %91 = vector.load %arg1[%c0_33, %c0_34, %c0_35] : memref<1x4x256xf32, #tpu.memory_space<vmem>>, vector<1x4x256xf32>
    %92 = vector.shape_cast %91 : vector<1x4x256xf32> to vector<4x256xf32>
    %c0_36 = arith.constant 0 : index
    %c0_37 = arith.constant 0 : index
    %c0_38 = arith.constant 0 : index
    %93 = vector.load %arg6[%c0_36, %c0_37, %c0_38] : memref<1x8x256xf32, #tpu.memory_space<vmem>>, vector<1x4x256xf32>
    %94 = vector.shape_cast %93 : vector<1x4x256xf32> to vector<4x256xf32>
    %95 = vector.shape_cast %92 : vector<4x256xf32> to vector<1x4x256xf32>
    tpu.vector_store %arg6[%c0_36, %c0_37, %c0_38], %95 {strides = array<i32>} : memref<1x8x256xf32, #tpu.memory_space<vmem>>, vector<1x4x256xf32>,
    %96 = vector.extract_strided_slice %90 {offsets = [0, 0], sizes = [4, 256], strides = [1, 1]} : vector<8x256xf32> to vector<4x256xf32>
    %c0_39 = arith.constant 0 : index
    %c4_40 = arith.constant 4 : index
    %c0_41 = arith.constant 0 : index
    %97 = vector.load %arg6[%c0_39, %c4_40, %c0_41] : memref<1x8x256xf32, #tpu.memory_space<vmem>>, vector<1x4x256xf32>
    %98 = vector.shape_cast %97 : vector<1x4x256xf32> to vector<4x256xf32>
    %99 = vector.shape_cast %96 : vector<4x256xf32> to vector<1x4x256xf32>
    tpu.vector_store %arg6[%c0_39, %c4_40, %c0_41], %99 {strides = array<i32>} : memref<1x8x256xf32, #tpu.memory_space<vmem>>, vector<1x4x256xf32>,
    return
  }
  func.func @transform_0(%arg0: i32) -> (i32, i32, i32) {
    %c0_i32 = arith.constant 0 : i32
    %c0_i32_0 = arith.constant 0 : i32
    %c0_i32_1 = arith.constant 0 : i32
    return %arg0, %c0_i32, %c0_i32_0 : i32, i32, i32
  }
  func.func @transform_1(%arg0: i32) -> (i32, i32) {
    %c0_i32 = arith.constant 0 : i32
    %c0_i32_0 = arith.constant 0 : i32
    %c0_i32_1 = arith.constant 0 : i32
    return %c0_i32, %c0_i32_0 : i32, i32
  }
  func.func @transform_2(%arg0: i32) -> (i32, i32) {
    %c0_i32 = arith.constant 0 : i32
    %c0_i32_0 = arith.constant 0 : i32
    %c0_i32_1 = arith.constant 0 : i32
    return %c0_i32, %c0_i32_0 : i32, i32
  }
  func.func @transform_3(%arg0: i32) -> (i32, i32) {
    %c0_i32 = arith.constant 0 : i32
    %c0_i32_0 = arith.constant 0 : i32
    %c0_i32_1 = arith.constant 0 : i32
    return %c0_i32, %c0_i32_0 : i32, i32
  }
  func.func @transform_4(%arg0: i32) -> (i32, i32) {
    %c0_i32 = arith.constant 0 : i32
    %c0_i32_0 = arith.constant 0 : i32
    %c0_i32_1 = arith.constant 0 : i32
    return %c0_i32, %c0_i32_0 : i32, i32
  }
  func.func @transform_5(%arg0: i32) -> (i32, i32, i32) {
    %c0_i32 = arith.constant 0 : i32
    %c0_i32_0 = arith.constant 0 : i32
    %c0_i32_1 = arith.constant 0 : i32
    return %arg0, %c0_i32, %c0_i32_0 : i32, i32, i32
  }
}

</mosaic_0001>

<llo_original>
// kernel: bottleneck_block.1
$region0: #{bottleneck_block.1}
  #allocation0 [shape = 'u32[]', space=smem, size = 0x4, offset = 0x4, fixed_abs, tag = 'smem constant byte address 0x4 - core index']
  #allocation1 [shape = 'u32[144,128]{1,0:T(1,128)}', space=vmem, size = 0x12000, scoped, tag = 'internal scratch']
  #allocation2 [shape = 'f32[144,256]{1,0:T(8,128)}', space=vmem, size = 0x24000, scoped, tag = 'scratch operand']
  %s0 = inlined_call_operand.vmem [shape: f32[2,4,256], index: 0, kind: input, shape index: {}]
  %s1 = inlined_call_operand.vmem [shape: f32[9,256], index: 1, kind: input, shape index: {}]
  %s2 = inlined_call_operand.vmem [shape: f32[16,3], index: 2, kind: input, shape index: {}]
  %s3 = inlined_call_operand.vmem [shape: f32[16,4], index: 3, kind: input, shape index: {}]
  %s4 = inlined_call_operand.vmem [shape: f32[8,144], index: 4, kind: input, shape index: {}]
  %s5 = inlined_call_operand.vmem [shape: f32[2,8,256], index: 5, kind: output, shape index: {}]
  %s6 = sld [smem:[#allocation0]]
  $region53: #{bottleneck_block.1} parent=0
    _
  %s8 = ssub.s32 1, %s6
  %s9 = scalar_select 0, %s8, %s6
  loop: start=0, step=1, limit=4
  $region2: #{bottleneck_block.1} parent=0 // loop_pre_header
    _
  $region3: #{bottleneck_block.1} parent=0 // loop_header
    %s11 = sphi 0, %s15
    %p12 = scmp.ge.s32.totalorder %s11, 4
    %s21 = sphi 0, %s23
    %s24 = sphi 0, %s21
    %s25 = sphi 0, %s24
    %s41 = sphi 0, %s25
    %s45 = sphi 0, %s45
    %s47 = sphi 0, %s45
    %s48 = sphi 0, %s47
    %s62 = sphi 0, %s48
    %s66 = sphi 0, %s66
    %s68 = sphi 0, %s66
    %s69 = sphi 0, %s68
    %s83 = sphi 0, %s69
    %s87 = sphi 0, %s87
    %s89 = sphi 0, %s87
    %s90 = sphi 0, %s89
    %s104 = sphi 0, %s90
    %s108 = sphi 0, %s108
    %s110 = sphi 0, %s108
    %s111 = sphi 0, %s110
    %s125 = sphi 0, %s111
    %s131 = sphi 0, %s133
    %s134 = sphi 0, %s131
    %s135 = sphi 0, %s134
    %s151 = sphi 0, %s135
  $region4: #{bottleneck_block.1} parent=0 // loop_header_branch
    %14 = sbr.rel (%p12) target = $region8
  $region5: #{bottleneck_block.1} parent=0 // loop_body
    %s16 = ssub.s32 %s11, 1
    %s17 = ssub.s32 %s11, 2
    %s18 = sadd.s32 %s11, 1
    %s19 = ssub.s32 %s11, %s18
    %p20 = scmp.eq.s32.totalorder %s19, 0
    %s22 = sadd.s32 %s21, 1
    %s23 = scalar_select %p20, %s21, %s22
    %p26 = pneg %p20
    %p27 = scmp.eq.s32.totalorder %s11, 1
    %p28 = por %p26, %p27
    %p29 = scmp.ne.s32.totalorder %s21, %s24
    %p30 = scmp.eq.s32.totalorder %s11, 0
    %p31 = por %p29, %p30
    %p32 = scmp.ne.s32.totalorder %s21, %s24
    %p33 = scmp.eq.s32.totalorder %s16, 1
    %p34 = por %p32, %p33
    %p35 = scmp.ne.s32.totalorder %s24, %s25
    %p36 = scmp.eq.s32.totalorder %s16, 0
    %p37 = por %p35, %p36
    %p38 = scmp.ne.s32.totalorder %s24, %s25
    %p39 = scmp.eq.s32.totalorder %s17, 1
    %p40 = por %p38, %p39
    %p42 = scmp.ne.s32.totalorder %s25, %s41
    %p43 = scmp.eq.s32.totalorder %s17, 0
    %p44 = por %p42, %p43
    %s46 = sadd.s32 %s45, 1
    %p49 = scmp.eq.s32.totalorder %s11, 1
    %p50 = scmp.ne.s32.totalorder %s45, %s47
    %p51 = scmp.eq.s32.totalorder %s11, 0
    %p52 = por %p50, %p51
    %p53 = scmp.ne.s32.totalorder %s45, %s47
    %p54 = scmp.eq.s32.totalorder %s16, 1
    %p55 = por %p53, %p54
    %p56 = scmp.ne.s32.totalorder %s47, %s48
    %p57 = scmp.eq.s32.totalorder %s16, 0
    %p58 = por %p56, %p57
    %p59 = scmp.ne.s32.totalorder %s47, %s48
    %p60 = scmp.eq.s32.totalorder %s17, 1
    %p61 = por %p59, %p60
    %p63 = scmp.ne.s32.totalorder %s48, %s62
    %p64 = scmp.eq.s32.totalorder %s17, 0
    %p65 = por %p63, %p64
    %s67 = sadd.s32 %s66, 1
    %p70 = scmp.eq.s32.totalorder %s11, 1
    %p71 = scmp.ne.s32.totalorder %s66, %s68
    %p72 = scmp.eq.s32.totalorder %s11, 0
    %p73 = por %p71, %p72
    %p74 = scmp.ne.s32.totalorder %s66, %s68
    %p75 = scmp.eq.s32.totalorder %s16, 1
    %p76 = por %p74, %p75
    %p77 = scmp.ne.s32.totalorder %s68, %s69
    %p78 = scmp.eq.s32.totalorder %s16, 0
    %p79 = por %p77, %p78
    %p80 = scmp.ne.s32.totalorder %s68, %s69
    %p81 = scmp.eq.s32.totalorder %s17, 1
    %p82 = por %p80, %p81
    %p84 = scmp.ne.s32.totalorder %s69, %s83
    %p85 = scmp.eq.s32.totalorder %s17, 0
    %p86 = por %p84, %p85
    %s88 = sadd.s32 %s87, 1
    %p91 = scmp.eq.s32.totalorder %s11, 1
    %p92 = scmp.ne.s32.totalorder %s87, %s89
    %p93 = scmp.eq.s32.totalorder %s11, 0
    %p94 = por %p92, %p93
    %p95 = scmp.ne.s32.totalorder %s87, %s89
    %p96 = scmp.eq.s32.totalorder %s16, 1
    %p97 = por %p95, %p96
    %p98 = scmp.ne.s32.totalorder %s89, %s90
    %p99 = scmp.eq.s32.totalorder %s16, 0
    %p100 = por %p98, %p99
    %p101 = scmp.ne.s32.totalorder %s89, %s90
    %p102 = scmp.eq.s32.totalorder %s17, 1
    %p103 = por %p101, %p102
    %p105 = scmp.ne.s32.totalorder %s90, %s104
    %p106 = scmp.eq.s32.totalorder %s17, 0
    %p107 = por %p105, %p106
    %s109 = sadd.s32 %s108, 1
    %p112 = scmp.eq.s32.totalorder %s11, 1
    %p113 = scmp.ne.s32.totalorder %s108, %s110
    %p114 = scmp.eq.s32.totalorder %s11, 0
    %p115 = por %p113, %p114
    %p116 = scmp.ne.s32.totalorder %s108, %s110
    %p117 = scmp.eq.s32.totalorder %s16, 1
    %p118 = por %p116, %p117
    %p119 = scmp.ne.s32.totalorder %s110, %s111
    %p120 = scmp.eq.s32.totalorder %s16, 0
    %p121 = por %p119, %p120
    %p122 = scmp.ne.s32.totalorder %s110, %s111
    %p123 = scmp.eq.s32.totalorder %s17, 1
    %p124 = por %p122, %p123
    %p126 = scmp.ne.s32.totalorder %s111, %s125
    %p127 = scmp.eq.s32.totalorder %s17, 0
    %p128 = por %p126, %p127
    %s129 = ssub.s32 %s11, %s18
    %p130 = scmp.eq.s32.totalorder %s129, 0
    %s132 = sadd.s32 %s131, 1
    %s133 = scalar_select %p130, %s131, %s132
    %p136 = pneg %p130
    %p137 = scmp.eq.s32.totalorder %s11, 1
    %p138 = por %p136, %p137
    %p139 = scmp.ne.s32.totalorder %s131, %s134
    %p140 = scmp.eq.s32.totalorder %s11, 0
    %p141 = por %p139, %p140
    %p142 = scmp.ne.s32.totalorder %s131, %s134
    %p143 = scmp.eq.s32.totalorder %s16, 1
    %p144 = por %p142, %p143
    %p145 = scmp.ne.s32.totalorder %s134, %s135
    %p146 = scmp.eq.s32.totalorder %s16, 0
    %p147 = por %p145, %p146
    %p148 = scmp.ne.s32.totalorder %s134, %s135
    %p149 = scmp.eq.s32.totalorder %s17, 1
    %p150 = por %p148, %p149
    %p152 = scmp.ne.s32.totalorder %s135, %s151
    %p153 = scmp.eq.s32.totalorder %s17, 0
    %p154 = por %p152, %p153
    %p155 = scmp.le.s32.totalorder 1, %s11
    %p156 = scmp.lt.s32.totalorder %s11, 3
    %p157 = pnand %p155, %p156
    %p158 = pneg %p157
    // Predicated region
    $region9: #{bottleneck_block.1} parent=5 // pred_check
      _
    $region10: #{bottleneck_block.1} parent=5 // pred_check_branch
      %160 = sbr.rel (%p157) target = $region12
    $region11: #{bottleneck_block.1} parent=5 // pred_region
      %s161 = ssub.s32 %s11, 1
      // Predicated region
      $region13: #{bottleneck_block.1} parent=11 // pred_check
        %p162 = pneg %p58
      $region14: #{bottleneck_block.1} parent=11 // pred_check_branch
        %164 = sbr.rel (%p162) target = $region16
      $region15: #{bottleneck_block.1} parent=11 // pred_region
        _
      $region16: #{bottleneck_block.1} parent=11 // pred_fallthru
        _
      // Predicated region
      $region17: #{bottleneck_block.1} parent=11 // pred_check
        %p165 = pneg %p79
      $region18: #{bottleneck_block.1} parent=11 // pred_check_branch
        %167 = sbr.rel (%p165) target = $region20
      $region19: #{bottleneck_block.1} parent=11 // pred_region
        _
      $region20: #{bottleneck_block.1} parent=11 // pred_fallthru
        _
      // Predicated region
      $region21: #{bottleneck_block.1} parent=11 // pred_check
        %p168 = pneg %p100
      $region22: #{bottleneck_block.1} parent=11 // pred_check_branch
        %170 = sbr.rel (%p168) target = $region24
      $region23: #{bottleneck_block.1} parent=11 // pred_region
        _
      $region24: #{bottleneck_block.1} parent=11 // pred_fallthru
        _
      // Predicated region
      $region25: #{bottleneck_block.1} parent=11 // pred_check
        %p171 = pneg %p121
      $region26: #{bottleneck_block.1} parent=11 // pred_check_branch
        %173 = sbr.rel (%p171) target = $region28
      $region27: #{bottleneck_block.1} parent=11 // pred_region
        _
      $region28: #{bottleneck_block.1} parent=11 // pred_fallthru
        _
    $region12: #{bottleneck_block.1} parent=5 // pred_fallthru
      _
    %p174 = scmp.lt.s32.totalorder %s11, 2
    // Predicated region
    $region29: #{bottleneck_block.1} parent=5 // pred_check
      %p175 = pneg %p174
    $region30: #{bottleneck_block.1} parent=5 // pred_check_branch
      %177 = sbr.rel (%p175) target = $region32
    $region31: #{bottleneck_block.1} parent=5 // pred_region
      // Predicated region
      $region33: #{bottleneck_block.1} parent=31 // pred_check
        %p178 = pneg %p31
      $region34: #{bottleneck_block.1} parent=31 // pred_check_branch
        %180 = sbr.rel (%p178) target = $region36
      $region35: #{bottleneck_block.1} parent=31 // pred_region
        %p181 = scmp.lt.s32.totalorder %s11, 1
        %s182 = scalar_select %p181, %s11, 1
        %s183 = smul.addr %s182, 2
        %s184 = smul.addr %s183, 4
        %s185 = scalar_lea.vmem %s0, %s184
      $region36: #{bottleneck_block.1} parent=31 // pred_fallthru
        _
    $region32: #{bottleneck_block.1} parent=5 // pred_fallthru
      _
    %p186 = scmp.le.s32.totalorder 1, %s11
    %p187 = scmp.lt.s32.totalorder %s11, 3
    %p188 = pnand %p186, %p187
    %p189 = pneg %p188
    // Predicated region
    $region37: #{bottleneck_block.1} parent=5 // pred_check
      _
    $region38: #{bottleneck_block.1} parent=5 // pred_check_branch
      %191 = sbr.rel (%p188) target = $region40
    $region39: #{bottleneck_block.1} parent=5 // pred_region
      %s192 = ssub.s32 %s11, 1
      %p193 = scmp.lt.s32.totalorder %s16, 1
      %s194 = scalar_select %p193, %s16, 1
      %s195 = smul.addr %s194, 2
      %s196 = smul.addr %s195, 4
      %s197 = scalar_lea.vmem %s0, %s196
      %p198 = pneg %p37
      %p199 = pneg %p34
      %p200 = pneg %p58
      %p201 = pneg %p55
      %p202 = pneg %p79
      %p203 = pneg %p76
      %p204 = pneg %p100
      %p205 = pneg %p97
      %p206 = pneg %p121
      %p207 = pneg %p118
      %p208 = pneg %p147
      %p209 = pneg %p144
      %p210 = scmp.lt.s32.totalorder %s16, 1
      %s211 = scalar_select %p210, %s16, 1
      %s212 = smul.addr %s211, 2
      %s213 = smul.addr %s212, 8
      %s214 = scalar_lea.vmem %s5, %s213
      %p215 = scmp.lt.s32.totalorder %s16, 1
      %s216 = scalar_select %p215, %s16, 1
      %s217 = smul.addr %s216, 2
      %s218 = smul.addr %s217, 4
      %s219 = scalar_lea.vmem %s0, %s218
      %p220 = scmp.lt.s32.totalorder %s16, 1
      %s221 = scalar_select %p220, %s16, 1
      %s222 = smul.addr %s221, 2
      %s223 = smul.addr %s222, 8
      %s224 = scalar_lea.vmem %s5, %s223
      %v225 = vld [vmem:[%s219] sm:$0xff]
      %v226 = vld [vmem:[%s2] sm:$0xff]
      %v227 = vld [vmem:[%s2 + $0x8] sm:$0xff]
      %229 = vset.pattern.permute.xlu0 0
      %230 = vperm.xlu0 %229, %v226
      %v231 = vpop.permute.xlu0 %230
      %v233 = vunpack.c.l.s4 839922192
      %v234 = vunpack.c.0.s8 %v233
      %v235 = vlaneseq
      %v236 = vshrl.u32 %v235, 7
      %v237 = vsub.s32 %v234, %v236
      %v238 = vrot.slane %v231, %v237
      %v240 = vmul.f32 %v225, %v238
      %241 = vset.pattern.permute.xlu0 1
      %242 = vperm.xlu0 %241, %v226
      %v243 = vpop.permute.xlu0 %242
      %v245 = vunpack.c.l.s4 839922192
      %v246 = vunpack.c.0.s8 %v245
      %v247 = vlaneseq
      %v248 = vshrl.u32 %v247, 7
      %v249 = vsub.s32 %v246, %v248
      %v250 = vrot.slane %v243, %v249
      %v252 = vadd.f32 %v240, %v250
      %v253 = vmax.f32 %v252, 0.0
      %v254 = vld [vmem:[%s3] sm:$0xff]
      %v255 = vld [vmem:[%s3 + $0x8] sm:$0xff]
      %256 = vset.pattern.permute.xlu0 2
      %257 = vperm.xlu0 %256, %v226
      %v258 = vpop.permute.xlu0 %257
      %261 = vset.pattern.permute.xlu0 2
      %262 = vperm.xlu0 %261, %v227
      %v263 = vpop.permute.xlu0 %262
      %266 = vset.pattern.permute.xlu0 0
      %267 = vperm.xlu0 %266, %v254
      %v268 = vpop.permute.xlu0 %267
      %271 = vset.pattern.permute.xlu0 0
      %272 = vperm.xlu0 %271, %v255
      %v273 = vpop.permute.xlu0 %272
      %v276 = vlaneseq
      %v277 = vshrl.u32 %v276, 7
      %v278 = vsub.s32 0, %v277
      %v279 = vrot.slane %v253, %v278
      %v280 = vlaneseq
      %v281 = vshrl.u32 %v280, 7
      %v282 = vsub.s32 4, %v281
      %v283 = vrot.slane %v253, %v282
      %v286 = vlaneseq
      %v287 = vshrl.u32 %v286, 7
      %v288 = vsub.s32 0, %v287
      %v289 = vrot.slane %v279, %v288
      %v290 = vlaneseq
      %v291 = vshrl.u32 %v290, 7
      %v292 = vsub.s32 0, %v291
      %v293 = vrot.slane %v283, %v292
      %v294 = vmul.f32 %v268, %v289
      %v295 = vmul.f32 %v268, %v293
      %v296 = vmul.f32 %v273, %v289
      %v297 = vmul.f32 %v273, %v293
      %v298 = vadd.f32 %v258, %v294
      %v299 = vadd.f32 %v258, %v295
      %v300 = vadd.f32 %v263, %v296
      %v301 = vadd.f32 %v263, %v297
      %302 = vset.pattern.permute.xlu0 1
      %303 = vperm.xlu0 %302, %v254
      %v304 = vpop.permute.xlu0 %303
      %306 = vset.pattern.permute.xlu0 1
      %307 = vperm.xlu0 %306, %v255
      %v308 = vpop.permute.xlu0 %307
      %v310 = vlaneseq
      %v311 = vshrl.u32 %v310, 7
      %v312 = vsub.s32 1, %v311
      %v313 = vrot.slane %v253, %v312
      %v314 = vlaneseq
      %v315 = vshrl.u32 %v314, 7
      %v316 = vsub.s32 5, %v315
      %v317 = vrot.slane %v253, %v316
      %v320 = vlaneseq
      %v321 = vshrl.u32 %v320, 7
      %v322 = vsub.s32 1, %v321
      %v323 = vrot.slane %v313, %v322
      %v324 = vlaneseq
      %v325 = vshrl.u32 %v324, 7
      %v326 = vsub.s32 1, %v325
      %v327 = vrot.slane %v317, %v326
      %v328 = vmul.f32 %v304, %v323
      %v329 = vmul.f32 %v304, %v327
      %v330 = vmul.f32 %v308, %v323
      %v331 = vmul.f32 %v308, %v327
      %v332 = vadd.f32 %v298, %v328
      %v333 = vadd.f32 %v299, %v329
      %v334 = vadd.f32 %v300, %v330
      %v335 = vadd.f32 %v301, %v331
      %336 = vset.pattern.permute.xlu0 2
      %337 = vperm.xlu0 %336, %v254
      %v338 = vpop.permute.xlu0 %337
      %340 = vset.pattern.permute.xlu0 2
      %341 = vperm.xlu0 %340, %v255
      %v342 = vpop.permute.xlu0 %341
      %v344 = vlaneseq
      %v345 = vshrl.u32 %v344, 7
      %v346 = vsub.s32 2, %v345
      %v347 = vrot.slane %v253, %v346
      %v348 = vlaneseq
      %v349 = vshrl.u32 %v348, 7
      %v350 = vsub.s32 6, %v349
      %v351 = vrot.slane %v253, %v350
      %v354 = vlaneseq
      %v355 = vshrl.u32 %v354, 7
      %v356 = vsub.s32 2, %v355
      %v357 = vrot.slane %v347, %v356
      %v358 = vlaneseq
      %v359 = vshrl.u32 %v358, 7
      %v360 = vsub.s32 2, %v359
      %v361 = vrot.slane %v351, %v360
      %v362 = vmul.f32 %v338, %v357
      %v363 = vmul.f32 %v338, %v361
      %v364 = vmul.f32 %v342, %v357
      %v365 = vmul.f32 %v342, %v361
      %v366 = vadd.f32 %v332, %v362
      %v367 = vadd.f32 %v333, %v363
      %v368 = vadd.f32 %v334, %v364
      %v369 = vadd.f32 %v335, %v365
      %370 = vset.pattern.permute.xlu0 3
      %371 = vperm.xlu0 %370, %v254
      %v372 = vpop.permute.xlu0 %371
      %374 = vset.pattern.permute.xlu0 3
      %375 = vperm.xlu0 %374, %v255
      %v376 = vpop.permute.xlu0 %375
      %v378 = vlaneseq
      %v379 = vshrl.u32 %v378, 7
      %v380 = vsub.s32 3, %v379
      %v381 = vrot.slane %v253, %v380
      %v382 = vlaneseq
      %v383 = vshrl.u32 %v382, 7
      %v384 = vsub.s32 7, %v383
      %v385 = vrot.slane %v253, %v384
      %v388 = vlaneseq
      %v389 = vshrl.u32 %v388, 7
      %v390 = vsub.s32 3, %v389
      %v391 = vrot.slane %v381, %v390
      %v392 = vlaneseq
      %v393 = vshrl.u32 %v392, 7
      %v394 = vsub.s32 3, %v393
      %v395 = vrot.slane %v385, %v394
      %v396 = vmul.f32 %v372, %v391
      %v397 = vmul.f32 %v372, %v395
      %v398 = vmul.f32 %v376, %v391
      %v399 = vmul.f32 %v376, %v395
      %v400 = vadd.f32 %v366, %v396
      %v401 = vadd.f32 %v367, %v397
      %v402 = vadd.f32 %v368, %v398
      %v403 = vadd.f32 %v369, %v399
      %v404 = vmax.f32 %v400, 0.0
      %v405 = vmax.f32 %v401, 0.0
      %v406 = vmax.f32 %v402, 0.0
      %v407 = vmax.f32 %v403, 0.0
      %412 = vrot.lane.b32.xlu0 %v404, 17
      %v413 = vpop.permute.xlu0 %412
      %414 = vrot.lane.b32.xlu0 %v405, 17
      %v415 = vpop.permute.xlu0 %414
      %416 = vrot.lane.b32.xlu0 %v406, 17
      %v417 = vpop.permute.xlu0 %416
      %418 = vrot.lane.b32.xlu0 %v407, 17
      %v419 = vpop.permute.xlu0 %418
      %vm420 = vcmask 138240
      %v421 = vsel %vm420, %v413, %v415
      %v422 = vsel %vm420, %v417, %v419
      %v429 = vsel %vm420, 0.0, %v413
      %v430 = vsel %vm420, 0.0, %v417
      %v431 = vsel %vm420, %v415, 0.0
      %v432 = vsel %vm420, %v419, 0.0
      %v433 = vld [vmem:[%s1] ss:$8 sm:$0x3]
      %v435 = vlaneseq
      %v436 = vshrl.u32 %v435, 7
      %v437 = vsub.s32 0, %v436
      %v438 = vrot.slane %v433, %v437
      %v439 = vlaneseq
      %v440 = vshrl.u32 %v439, 7
      %v441 = vsub.s32 1, %v440
      %v442 = vrot.slane %v433, %v441
      %v445 = vmul.f32 %v429, %v438
      %v446 = vmul.f32 %v421, %v442
      %v447 = vmul.f32 %v430, %v438
      %v448 = vmul.f32 %v422, %v442
      %449 = vst [vmem:[#allocation2] sm:$0xff] %v445
      %450 = vst [vmem:[#allocation2 + $0x8] sm:$0xff] %v446
      %451 = vst [vmem:[#allocation2 + $0x10] sm:$0xff] %v447
      %452 = vst [vmem:[#allocation2 + $0x18] sm:$0xff] %v448
      %s453 = scalar_lea.vmem %s1, 1
      %v454 = vld [vmem:[%s453] ss:$8 sm:$0x3]
      %v456 = vlaneseq
      %v457 = vshrl.u32 %v456, 7
      %v458 = vsub.s32 0, %v457
      %v459 = vrot.slane %v454, %v458
      %v460 = vlaneseq
      %v461 = vshrl.u32 %v460, 7
      %v462 = vsub.s32 1, %v461
      %v463 = vrot.slane %v454, %v462
      %464 = vrot.lane.b32.xlu0 %v459, 1
      %v465 = vpop.permute.xlu0 %464
      %466 = vrot.lane.b32.xlu0 %v463, 1
      %v467 = vpop.permute.xlu0 %466
      %vm468 = vcmask 7168
      %v469 = vsel %vm468, %v465, %v467
      %v473 = vmul.f32 %v429, %v465
      %v474 = vmul.f32 %v421, %v469
      %v475 = vmul.f32 %v431, %v467
      %v476 = vmul.f32 %v430, %v465
      %v477 = vmul.f32 %v422, %v469
      %v478 = vmul.f32 %v432, %v467
      %485 = vrot.lane.b32.xlu0 %v473, 127
      %v486 = vpop.permute.xlu0 %485
      %487 = vrot.lane.b32.xlu0 %v474, 127
      %v488 = vpop.permute.xlu0 %487
      %489 = vrot.lane.b32.xlu0 %v475, 127
      %v490 = vpop.permute.xlu0 %489
      %491 = vrot.lane.b32.xlu0 %v476, 127
      %v492 = vpop.permute.xlu0 %491
      %493 = vrot.lane.b32.xlu0 %v477, 127
      %v494 = vpop.permute.xlu0 %493
      %495 = vrot.lane.b32.xlu0 %v478, 127
      %v496 = vpop.permute.xlu0 %495
      %vm497 = vcmask 1039360
      %v498 = vsel %vm497, %v486, %v488
      %v499 = vsel %vm497, %v488, %v490
      %v500 = vsel %vm497, %v492, %v494
      %v501 = vsel %vm497, %v494, %v496
      %506 = vst [vmem:[#allocation2 + $0x20] sm:$0xff] %v498
      %507 = vst [vmem:[#allocation2 + $0x28] sm:$0xff] %v499
      %508 = vst [vmem:[#allocation2 + $0x30] sm:$0xff] %v500
      %509 = vst [vmem:[#allocation2 + $0x38] sm:$0xff] %v501
      %s510 = scalar_lea.vmem %s1, 2
      %v511 = vld [vmem:[%s510] ss:$8 sm:$0x3]
      %v513 = vlaneseq
      %v514 = vshrl.u32 %v513, 7
      %v515 = vsub.s32 0, %v514
      %v516 = vrot.slane %v511, %v515
      %v517 = vlaneseq
      %v518 = vshrl.u32 %v517, 7
      %v519 = vsub.s32 1, %v518
      %v520 = vrot.slane %v511, %v519
      %521 = vrot.lane.b32.xlu0 %v516, 2
      %v522 = vpop.permute.xlu0 %521
      %523 = vrot.lane.b32.xlu0 %v520, 2
      %v524 = vpop.permute.xlu0 %523
      %vm525 = vcmask 15360
      %v526 = vsel %vm525, %v522, %v524
      %v530 = vmul.f32 %v429, %v522
      %v531 = vmul.f32 %v421, %v526
      %v532 = vmul.f32 %v431, %v524
      %v533 = vmul.f32 %v430, %v522
      %v534 = vmul.f32 %v422, %v526
      %v535 = vmul.f32 %v432, %v524
      %542 = vrot.lane.b32.xlu0 %v530, 126
      %v543 = vpop.permute.xlu0 %542
      %544 = vrot.lane.b32.xlu0 %v531, 126
      %v545 = vpop.permute.xlu0 %544
      %546 = vrot.lane.b32.xlu0 %v532, 126
      %v547 = vpop.permute.xlu0 %546
      %548 = vrot.lane.b32.xlu0 %v533, 126
      %v549 = vpop.permute.xlu0 %548
      %550 = vrot.lane.b32.xlu0 %v534, 126
      %v551 = vpop.permute.xlu0 %550
      %552 = vrot.lane.b32.xlu0 %v535, 126
      %v553 = vpop.permute.xlu0 %552
      %vm554 = vcmask 1031168
      %v555 = vsel %vm554, %v543, %v545
      %v556 = vsel %vm554, %v545, %v547
      %v557 = vsel %vm554, %v549, %v551
      %v558 = vsel %vm554, %v551, %v553
      %563 = vst [vmem:[#allocation2 + $0x40] sm:$0xff] %v555
      %564 = vst [vmem:[#allocation2 + $0x48] sm:$0xff] %v556
      %565 = vst [vmem:[#allocation2 + $0x50] sm:$0xff] %v557
      %566 = vst [vmem:[#allocation2 + $0x58] sm:$0xff] %v558
      %s567 = scalar_lea.vmem %s1, 3
      %v568 = vld [vmem:[%s567] ss:$8 sm:$0x3]
      %v570 = vlaneseq
      %v571 = vshrl.u32 %v570, 7
      %v572 = vsub.s32 0, %v571
      %v573 = vrot.slane %v568, %v572
      %v574 = vlaneseq
      %v575 = vshrl.u32 %v574, 7
      %v576 = vsub.s32 1, %v575
      %v577 = vrot.slane %v568, %v576
      %578 = vrot.lane.b32.xlu0 %v573, 16
      %v579 = vpop.permute.xlu0 %578
      %580 = vrot.lane.b32.xlu0 %v577, 16
      %v581 = vpop.permute.xlu0 %580
      %vm582 = vcmask 130048
      %v583 = vsel %vm582, %v579, %v581
      %v587 = vmul.f32 %v429, %v579
      %v588 = vmul.f32 %v421, %v583
      %v589 = vmul.f32 %v431, %v581
      %v590 = vmul.f32 %v430, %v579
      %v591 = vmul.f32 %v422, %v583
      %v592 = vmul.f32 %v432, %v581
      %599 = vrot.lane.b32.xlu0 %v587, 112
      %v600 = vpop.permute.xlu0 %599
      %601 = vrot.lane.b32.xlu0 %v588, 112
      %v602 = vpop.permute.xlu0 %601
      %603 = vrot.lane.b32.xlu0 %v589, 112
      %v604 = vpop.permute.xlu0 %603
      %605 = vrot.lane.b32.xlu0 %v590, 112
      %v606 = vpop.permute.xlu0 %605
      %607 = vrot.lane.b32.xlu0 %v591, 112
      %v608 = vpop.permute.xlu0 %607
      %609 = vrot.lane.b32.xlu0 %v592, 112
      %v610 = vpop.permute.xlu0 %609
      %vm611 = vcmask 916480
      %v612 = vsel %vm611, %v600, %v602
      %v613 = vsel %vm611, %v602, %v604
      %v614 = vsel %vm611, %v606, %v608
      %v615 = vsel %vm611, %v608, %v610
      %620 = vst [vmem:[#allocation2 + $0x60] sm:$0xff] %v612
      %621 = vst [vmem:[#allocation2 + $0x68] sm:$0xff] %v613
      %622 = vst [vmem:[#allocation2 + $0x70] sm:$0xff] %v614
      %623 = vst [vmem:[#allocation2 + $0x78] sm:$0xff] %v615
      %s624 = scalar_lea.vmem %s1, 4
      %v625 = vld [vmem:[%s624] ss:$8 sm:$0x3]
      %v627 = vlaneseq
      %v628 = vshrl.u32 %v627, 7
      %v629 = vsub.s32 0, %v628
      %v630 = vrot.slane %v625, %v629
      %v631 = vlaneseq
      %v632 = vshrl.u32 %v631, 7
      %v633 = vsub.s32 1, %v632
      %v634 = vrot.slane %v625, %v633
      %635 = vrot.lane.b32.xlu0 %v630, 17
      %v636 = vpop.permute.xlu0 %635
      %637 = vrot.lane.b32.xlu0 %v634, 17
      %v638 = vpop.permute.xlu0 %637
      %v639 = vsel %vm420, %v636, %v638
      %v643 = vmul.f32 %v429, %v636
      %v644 = vmul.f32 %v421, %v639
      %v645 = vmul.f32 %v431, %v638
      %v646 = vmul.f32 %v430, %v636
      %v647 = vmul.f32 %v422, %v639
      %v648 = vmul.f32 %v432, %v638
      %655 = vrot.lane.b32.xlu0 %v643, 111
      %v656 = vpop.permute.xlu0 %655
      %657 = vrot.lane.b32.xlu0 %v644, 111
      %v658 = vpop.permute.xlu0 %657
      %659 = vrot.lane.b32.xlu0 %v645, 111
      %v660 = vpop.permute.xlu0 %659
      %661 = vrot.lane.b32.xlu0 %v646, 111
      %v662 = vpop.permute.xlu0 %661
      %663 = vrot.lane.b32.xlu0 %v647, 111
      %v664 = vpop.permute.xlu0 %663
      %665 = vrot.lane.b32.xlu0 %v648, 111
      %v666 = vpop.permute.xlu0 %665
      %vm667 = vcmask 908288
      %v668 = vsel %vm667, %v656, %v658
      %v669 = vsel %vm667, %v658, %v660
      %v670 = vsel %vm667, %v662, %v664
      %v671 = vsel %vm667, %v664, %v666
      %676 = vst [vmem:[#allocation2 + $0x80] sm:$0xff] %v668
      %677 = vst [vmem:[#allocation2 + $0x88] sm:$0xff] %v669
      %678 = vst [vmem:[#allocation2 + $0x90] sm:$0xff] %v670
      %679 = vst [vmem:[#allocation2 + $0x98] sm:$0xff] %v671
      %s680 = scalar_lea.vmem %s1, 5
      %v681 = vld [vmem:[%s680] ss:$8 sm:$0x3]
      %v683 = vlaneseq
      %v684 = vshrl.u32 %v683, 7
      %v685 = vsub.s32 0, %v684
      %v686 = vrot.slane %v681, %v685
      %v687 = vlaneseq
      %v688 = vshrl.u32 %v687, 7
      %v689 = vsub.s32 1, %v688
      %v690 = vrot.slane %v681, %v689
      %691 = vrot.lane.b32.xlu0 %v686, 18
      %v692 = vpop.permute.xlu0 %691
      %693 = vrot.lane.b32.xlu0 %v690, 18
      %v694 = vpop.permute.xlu0 %693
      %vm695 = vcmask 146432
      %v696 = vsel %vm695, %v692, %v694
      %v700 = vmul.f32 %v429, %v692
      %v701 = vmul.f32 %v421, %v696
      %v702 = vmul.f32 %v431, %v694
      %v703 = vmul.f32 %v430, %v692
      %v704 = vmul.f32 %v422, %v696
      %v705 = vmul.f32 %v432, %v694
      %712 = vrot.lane.b32.xlu0 %v700, 110
      %v713 = vpop.permute.xlu0 %712
      %714 = vrot.lane.b32.xlu0 %v701, 110
      %v715 = vpop.permute.xlu0 %714
      %716 = vrot.lane.b32.xlu0 %v702, 110
      %v717 = vpop.permute.xlu0 %716
      %718 = vrot.lane.b32.xlu0 %v703, 110
      %v719 = vpop.permute.xlu0 %718
      %720 = vrot.lane.b32.xlu0 %v704, 110
      %v721 = vpop.permute.xlu0 %720
      %722 = vrot.lane.b32.xlu0 %v705, 110
      %v723 = vpop.permute.xlu0 %722
      %vm724 = vcmask 900096
      %v725 = vsel %vm724, %v713, %v715
      %v726 = vsel %vm724, %v715, %v717
      %v727 = vsel %vm724, %v719, %v721
      %v728 = vsel %vm724, %v721, %v723
      %733 = vst [vmem:[#allocation2 + $0xa0] sm:$0xff] %v725
      %734 = vst [vmem:[#allocation2 + $0xa8] sm:$0xff] %v726
      %735 = vst [vmem:[#allocation2 + $0xb0] sm:$0xff] %v727
      %736 = vst [vmem:[#allocation2 + $0xb8] sm:$0xff] %v728
      %s737 = scalar_lea.vmem %s1, 6
      %v738 = vld [vmem:[%s737] ss:$8 sm:$0x3]
      %v740 = vlaneseq
      %v741 = vshrl.u32 %v740, 7
      %v742 = vsub.s32 0, %v741
      %v743 = vrot.slane %v738, %v742
      %v744 = vlaneseq
      %v745 = vshrl.u32 %v744, 7
      %v746 = vsub.s32 1, %v745
      %v747 = vrot.slane %v738, %v746
      %748 = vrot.lane.b32.xlu0 %v743, 32
      %v749 = vpop.permute.xlu0 %748
      %750 = vrot.lane.b32.xlu0 %v747, 32
      %v751 = vpop.permute.xlu0 %750
      %vm752 = vcmask 261120
      %v753 = vsel %vm752, %v749, %v751
      %v757 = vmul.f32 %v429, %v749
      %v758 = vmul.f32 %v421, %v753
      %v759 = vmul.f32 %v431, %v751
      %v760 = vmul.f32 %v430, %v749
      %v761 = vmul.f32 %v422, %v753
      %v762 = vmul.f32 %v432, %v751
      %769 = vrot.lane.b32.xlu0 %v757, 96
      %v770 = vpop.permute.xlu0 %769
      %771 = vrot.lane.b32.xlu0 %v758, 96
      %v772 = vpop.permute.xlu0 %771
      %773 = vrot.lane.b32.xlu0 %v759, 96
      %v774 = vpop.permute.xlu0 %773
      %775 = vrot.lane.b32.xlu0 %v760, 96
      %v776 = vpop.permute.xlu0 %775
      %777 = vrot.lane.b32.xlu0 %v761, 96
      %v778 = vpop.permute.xlu0 %777
      %779 = vrot.lane.b32.xlu0 %v762, 96
      %v780 = vpop.permute.xlu0 %779
      %vm781 = vcmask 785408
      %v782 = vsel %vm781, %v770, %v772
      %v783 = vsel %vm781, %v772, %v774
      %v784 = vsel %vm781, %v776, %v778
      %v785 = vsel %vm781, %v778, %v780
      %790 = vst [vmem:[#allocation2 + $0xc0] sm:$0xff] %v782
      %791 = vst [vmem:[#allocation2 + $0xc8] sm:$0xff] %v783
      %792 = vst [vmem:[#allocation2 + $0xd0] sm:$0xff] %v784
      %793 = vst [vmem:[#allocation2 + $0xd8] sm:$0xff] %v785
      %s794 = scalar_lea.vmem %s1, 7
      %v795 = vld [vmem:[%s794] ss:$8 sm:$0x3]
      %v797 = vlaneseq
      %v798 = vshrl.u32 %v797, 7
      %v799 = vsub.s32 0, %v798
      %v800 = vrot.slane %v795, %v799
      %v801 = vlaneseq
      %v802 = vshrl.u32 %v801, 7
      %v803 = vsub.s32 1, %v802
      %v804 = vrot.slane %v795, %v803
      %805 = vrot.lane.b32.xlu0 %v800, 33
      %v806 = vpop.permute.xlu0 %805
      %807 = vrot.lane.b32.xlu0 %v804, 33
      %v808 = vpop.permute.xlu0 %807
      %vm809 = vcmask 269312
      %v810 = vsel %vm809, %v806, %v808
      %v814 = vmul.f32 %v429, %v806
      %v815 = vmul.f32 %v421, %v810
      %v816 = vmul.f32 %v431, %v808
      %v817 = vmul.f32 %v430, %v806
      %v818 = vmul.f32 %v422, %v810
      %v819 = vmul.f32 %v432, %v808
      %826 = vrot.lane.b32.xlu0 %v814, 95
      %v827 = vpop.permute.xlu0 %826
      %828 = vrot.lane.b32.xlu0 %v815, 95
      %v829 = vpop.permute.xlu0 %828
      %830 = vrot.lane.b32.xlu0 %v816, 95
      %v831 = vpop.permute.xlu0 %830
      %832 = vrot.lane.b32.xlu0 %v817, 95
      %v833 = vpop.permute.xlu0 %832
      %834 = vrot.lane.b32.xlu0 %v818, 95
      %v835 = vpop.permute.xlu0 %834
      %836 = vrot.lane.b32.xlu0 %v819, 95
      %v837 = vpop.permute.xlu0 %836
      %vm838 = vcmask 777216
      %v839 = vsel %vm838, %v827, %v829
      %v840 = vsel %vm838, %v829, %v831
      %v841 = vsel %vm838, %v833, %v835
      %v842 = vsel %vm838, %v835, %v837
      %847 = vst [vmem:[#allocation2 + $0xe0] sm:$0xff] %v839
      %848 = vst [vmem:[#allocation2 + $0xe8] sm:$0xff] %v840
      %849 = vst [vmem:[#allocation2 + $0xf0] sm:$0xff] %v841
      %850 = vst [vmem:[#allocation2 + $0xf8] sm:$0xff] %v842
      %s851 = scalar_lea.vmem %s1, 16
      %v852 = vld [vmem:[%s851] ss:$8 sm:$0x3]
      %v854 = vlaneseq
      %v855 = vshrl.u32 %v854, 7
      %v856 = vsub.s32 0, %v855
      %v857 = vrot.slane %v852, %v856
      %v858 = vlaneseq
      %v859 = vshrl.u32 %v858, 7
      %v860 = vsub.s32 1, %v859
      %v861 = vrot.slane %v852, %v860
      %862 = vrot.lane.b32.xlu0 %v857, 34
      %v863 = vpop.permute.xlu0 %862
      %864 = vrot.lane.b32.xlu0 %v861, 34
      %v865 = vpop.permute.xlu0 %864
      %vm866 = vcmask 277504
      %v867 = vsel %vm866, %v863, %v865
      %v871 = vmul.f32 %v429, %v863
      %v872 = vmul.f32 %v421, %v867
      %v873 = vmul.f32 %v431, %v865
      %v874 = vmul.f32 %v430, %v863
      %v875 = vmul.f32 %v422, %v867
      %v876 = vmul.f32 %v432, %v865
      %883 = vrot.lane.b32.xlu0 %v871, 94
      %v884 = vpop.permute.xlu0 %883
      %885 = vrot.lane.b32.xlu0 %v872, 94
      %v886 = vpop.permute.xlu0 %885
      %887 = vrot.lane.b32.xlu0 %v873, 94
      %v888 = vpop.permute.xlu0 %887
      %889 = vrot.lane.b32.xlu0 %v874, 94
      %v890 = vpop.permute.xlu0 %889
      %891 = vrot.lane.b32.xlu0 %v875, 94
      %v892 = vpop.permute.xlu0 %891
      %893 = vrot.lane.b32.xlu0 %v876, 94
      %v894 = vpop.permute.xlu0 %893
      %vm895 = vcmask 769024
      %v896 = vsel %vm895, %v884, %v886
      %v897 = vsel %vm895, %v886, %v888
      %v898 = vsel %vm895, %v890, %v892
      %v899 = vsel %vm895, %v892, %v894
      %904 = vst [vmem:[#allocation2 + $0x100] sm:$0xff] %v896
      %905 = vst [vmem:[#allocation2 + $0x108] sm:$0xff] %v897
      %906 = vst [vmem:[#allocation2 + $0x110] sm:$0xff] %v898
      %907 = vst [vmem:[#allocation2 + $0x118] sm:$0xff] %v899
      %v908 = vld [vmem:[%s4] sm:$0xff]
      %v909 = vld [vmem:[%s4 + $0x8] sm:$0xff]
      %v910 = vld [vmem:[#allocation2] sm:$0xff]
      %v911 = vld [vmem:[#allocation2 + $0x8] sm:$0xff]
      %v912 = vld [vmem:[#allocation2 + $0x10] sm:$0xff]
      %v913 = vld [vmem:[#allocation2 + $0x18] sm:$0xff]
      %v914 = vld [vmem:[#allocation2 + $0x20] sm:$0xff]
      %v915 = vld [vmem:[#allocation2 + $0x28] sm:$0xff]
      %v916 = vld [vmem:[#allocation2 + $0x30] sm:$0xff]
      %v917 = vld [vmem:[#allocation2 + $0x38] sm:$0xff]
      %v918 = vld [vmem:[#allocation2 + $0x40] sm:$0xff]
      %v919 = vld [vmem:[#allocation2 + $0x48] sm:$0xff]
      %v920 = vld [vmem:[#allocation2 + $0x50] sm:$0xff]
      %v921 = vld [vmem:[#allocation2 + $0x58] sm:$0xff]
      %v922 = vld [vmem:[#allocation2 + $0x60] sm:$0xff]
      %v923 = vld [vmem:[#allocation2 + $0x68] sm:$0xff]
      %v924 = vld [vmem:[#allocation2 + $0x70] sm:$0xff]
      %v925 = vld [vmem:[#allocation2 + $0x78] sm:$0xff]
      %v926 = vld [vmem:[#allocation2 + $0x80] sm:$0xff]
      %v927 = vld [vmem:[#allocation2 + $0x88] sm:$0xff]
      %v928 = vld [vmem:[#allocation2 + $0x90] sm:$0xff]
      %v929 = vld [vmem:[#allocation2 + $0x98] sm:$0xff]
      %v930 = vld [vmem:[#allocation2 + $0xa0] sm:$0xff]
      %v931 = vld [vmem:[#allocation2 + $0xa8] sm:$0xff]
      %v932 = vld [vmem:[#allocation2 + $0xb0] sm:$0xff]
      %v933 = vld [vmem:[#allocation2 + $0xb8] sm:$0xff]
      %v934 = vld [vmem:[#allocation2 + $0xc0] sm:$0xff]
      %v935 = vld [vmem:[#allocation2 + $0xc8] sm:$0xff]
      %v936 = vld [vmem:[#allocation2 + $0xd0] sm:$0xff]
      %v937 = vld [vmem:[#allocation2 + $0xd8] sm:$0xff]
      %v938 = vld [vmem:[#allocation2 + $0xe0] sm:$0xff]
      %v939 = vld [vmem:[#allocation2 + $0xe8] sm:$0xff]
      %v940 = vld [vmem:[#allocation2 + $0xf0] sm:$0xff]
      %v941 = vld [vmem:[#allocation2 + $0xf8] sm:$0xff]
      %v942 = vld [vmem:[#allocation2 + $0x100] sm:$0xff]
      %v943 = vld [vmem:[#allocation2 + $0x108] sm:$0xff]
      %v944 = vld [vmem:[#allocation2 + $0x110] sm:$0xff]
      %v945 = vld [vmem:[#allocation2 + $0x118] sm:$0xff]
      %v947 = vsel %vm582, %v909, 0
      %949 = vmatprep.subr.mxu0 %v911
      %950 = vmatpush1.msra.mxu0 %v910
      %951 = vmatprep.subr.mxu0 %v913
      %952 = vmatpush1.msra.mxu0 %v912
      %953 = vmatprep.subr.mxu0 %v915
      %954 = vmatpush1.msra.mxu0 %v914
      %955 = vmatprep.subr.mxu0 %v917
      %956 = vmatpush1.msra.mxu0 %v916
      %957 = vmatprep.subr.mxu0 %v919
      %958 = vmatpush1.msra.mxu0 %v918
      %959 = vmatprep.subr.mxu0 %v921
      %960 = vmatpush1.msra.mxu0 %v920
      %961 = vmatprep.subr.mxu0 %v923
      %962 = vmatpush1.msra.mxu0 %v922
      %963 = vmatprep.subr.mxu0 %v925
      %964 = vmatpush1.msra.mxu0 %v924
      %965 = vmatprep.subr.mxu0 %v927
      %966 = vmatpush1.msra.mxu0 %v926
      %967 = vmatprep.subr.mxu0 %v929
      %968 = vmatpush1.msra.mxu0 %v928
      %969 = vmatprep.subr.mxu0 %v931
      %970 = vmatpush1.msra.mxu0 %v930
      %971 = vmatprep.subr.mxu0 %v933
      %972 = vmatpush1.msra.mxu0 %v932
      %973 = vmatprep.subr.mxu0 %v935
      %974 = vmatpush1.msra.mxu0 %v934
      %975 = vmatprep.subr.mxu0 %v937
      %976 = vmatpush1.msra.mxu0 %v936
      %977 = vmatprep.subr.mxu0 %v939
      %978 = vmatpush1.msra.mxu0 %v938
      %979 = vmatprep.subr.mxu0 %v941
      %980 = vmatpush1.msra.mxu0 %v940
      %981 = vmatprep.subr.mxu0 %v943
      %982 = vmatpush1.msra.mxu0 %v942
      %983 = vmatprep.subr.mxu0 %v945
      %984 = vmatpush1.msra.mxu0 %v944
      %985 = vmatprep.subr.mxu0 0.0
      %986 = vmatpush1.msra.mxu0 0.0
      %987 = vmatprep.subr.mxu0 0.0
      %988 = vmatpush1.msra.mxu0 0.0
      %989 = vmatprep.subr.mxu0 0.0
      %990 = vmatpush1.msra.mxu0 0.0
      %991 = vmatprep.subr.mxu0 0.0
      %992 = vmatpush1.msra.mxu0 0.0
      %993 = vmatprep.subr.mxu0 0.0
      %994 = vmatpush1.msra.mxu0 0.0
      %995 = vmatprep.subr.mxu0 0.0
      %996 = vmatpush1.msra.mxu0 0.0
      %997 = vmatprep.subr.mxu0 0.0
      %998 = vmatpush1.msra.mxu0 0.0
      %999 = vmatprep.subr.mxu0 0.0
      %1000 = vmatpush1.msra.mxu0 0.0
      %1001 = vmatprep.subr.mxu0 0.0
      %1002 = vmatpush1.msra.mxu0 0.0
      %1003 = vmatprep.subr.mxu0 0.0
      %1004 = vmatpush1.msra.mxu0 0.0
      %1005 = vmatprep.subr.mxu0 0.0
      %1006 = vmatpush1.msra.mxu0 0.0
      %1007 = vmatprep.subr.mxu0 0.0
      %1008 = vmatpush1.msra.mxu0 0.0
      %1009 = vmatprep.subr.mxu0 0.0
      %1010 = vmatpush1.msra.mxu0 0.0
      %1011 = vmatprep.subr.mxu0 0.0
      %1012 = vmatpush1.msra.mxu0 0.0
      %1013 = vmatprep.mubr.f32.mxu0 %v947
      %1014 = vmatmul.mubr.f32.gmra.mrb[0].mxu0 %v908
      %v1015 = vpop.f32.mrb[0].mxu0
      %v1016 = vadd.f32 0.0, %v1015
      %v1017 = vpop.f32.mrb[0].mxu0
      %v1018 = vadd.f32 0.0, %v1017
      %1019 = vdwg.mxu0
      %v1020 = vld [vmem:[%s219] sm:$0xff]
      %v1022 = vcombine.high %v1020, %v1020
      %1024 = vst [vmem:[%s224] sm:$0xf] %v1020
      %1025 = vst [vmem:[%s224 + $0x8] sm:$0xf] %v1022
      %v1028 = vrot.slane %v1016, 4
      %v1029 = vrot.slane %v1018, 4
      %1032 = vst [vmem:[%s224] sm:$0xf0] %v1028
      %1033 = vst [vmem:[%s224 + $0x8] sm:$0xf0] %v1029
      %p1034 = scmp.lt.s32.totalorder %s16, 1
      %s1035 = scalar_select %p1034, %s16, 1
      %s1036 = smul.addr %s1035, 2
      %s1037 = smul.addr %s1036, 8
      %s1038 = scalar_lea.vmem %s5, %s1037
      // Predicated region
      $region41: #{bottleneck_block.1} parent=39 // pred_check
        %p1039 = pneg %p144
      $region42: #{bottleneck_block.1} parent=39 // pred_check_branch
        %1041 = sbr.rel (%p1039) target = $region44
      $region43: #{bottleneck_block.1} parent=39 // pred_region
        _
      $region44: #{bottleneck_block.1} parent=39 // pred_fallthru
        _
    $region40: #{bottleneck_block.1} parent=5 // pred_fallthru
      _
    %p1042 = scmp.le.s32.totalorder 2, %s11
    // Predicated region
    $region45: #{bottleneck_block.1} parent=5 // pred_check
      %p1043 = pneg %p1042
    $region46: #{bottleneck_block.1} parent=5 // pred_check_branch
      %1045 = sbr.rel (%p1043) target = $region48
    $region47: #{bottleneck_block.1} parent=5 // pred_region
      %s1046 = ssub.s32 %s11, 2
      // Predicated region
      $region49: #{bottleneck_block.1} parent=47 // pred_check
        %p1047 = pneg %p150
      $region50: #{bottleneck_block.1} parent=47 // pred_check_branch
        %1049 = sbr.rel (%p1047) target = $region52
      $region51: #{bottleneck_block.1} parent=47 // pred_region
        %p1050 = scmp.lt.s32.totalorder %s17, 1
        %s1051 = scalar_select %p1050, %s17, 1
        %s1052 = smul.addr %s1051, 2
        %s1053 = smul.addr %s1052, 8
        %s1054 = scalar_lea.vmem %s5, %s1053
      $region52: #{bottleneck_block.1} parent=47 // pred_fallthru
        _
    $region48: #{bottleneck_block.1} parent=5 // pred_fallthru
      _
  $region6: #{bottleneck_block.1} parent=0 // loop_footer
    %s15 = sadd.s32 1, %s11
  $region7: #{bottleneck_block.1} parent=0 // loop_footer_branch
    %10 = sbr.rel target = $region3
  $region8: #{bottleneck_block.1} parent=0 // loop_exit
    _

</llo_original>
